<compile_context>
chip_gen: v6e
topology: v6e:2x2x1
jax: 0.10.0
libtpu: 0.0.40
codegen_flags: <defaults>
</compile_context>

<pallas_src>
import jax
import jax.numpy as jnp
from jax.experimental import pallas as pl
from jax.experimental.pallas import tpu as pltpu


# ----------------------------- Pallas kernel -------------------------------

def _decoder_kernel(x_ref, w1_ref, b1_ref, w2_ref, b2_ref, o_ref):
    # Linear1 (+ folded BN1) -> ReLU.  bf16 MXU operands, f32 accumulation.
    x = x_ref[...].astype(jnp.bfloat16)
    h = jnp.dot(x, w1_ref[...], preferred_element_type=jnp.float32)
    h = jnp.maximum(h + b1_ref[...], 0.0)
    # Dropout(0.2) in eval mode == identity.
    # Linear2 (+ folded BN2) -> Sigmoid.
    y = jnp.dot(h.astype(jnp.bfloat16), w2_ref[...],
                preferred_element_type=jnp.float32)
    y = y + b2_ref[...]
    # sigmoid(y) = 1 / (1 + exp(-y)); exp on EUP, approx reciprocal on EUP.
    o_ref[...] = pl.reciprocal(1.0 + jnp.exp(-y), approx=True).astype(o_ref.dtype)


# ------------------------------- helpers ------------------------------------

def _round_up(n, m):
    return ((n + m - 1) // m) * m


def _pad_2d(a, rows, cols):
    return jnp.pad(a, ((0, rows - a.shape[0]), (0, cols - a.shape[1])))


def _vmem_capacity_bytes():
    try:
        return int(pltpu.get_tpu_info().vmem_capacity_bytes)
    except Exception:
        return 64 * 1024 * 1024  # conservative fallback (v7x-sized)


# ----------------------- one-time parameter preparation ---------------------

def prepare_decoder_params(params, *, is_enable_bath_norm):
    """Fold eval-mode BatchNorm into the Linears, pad feature dims to the lane
    width and cast weights to bf16.  Call once outside the hot path."""
    w1, b1 = params["w1"], params["b1"]
    w2, b2 = params["w2"], params["b2"]
    E, I = w1.shape
    O = w2.shape[1]

    if is_enable_bath_norm:
        eps = 1e-5
        s1 = params["bn1_gamma"] * jax.lax.rsqrt(params["bn1_var"] + eps)
        t1 = params["bn1_beta"] - params["bn1_mean"] * s1
        s2 = params["bn2_gamma"] * jax.lax.rsqrt(params["bn2_var"] + eps)
        t2 = params["bn2_beta"] - params["bn2_mean"] * s2
        w1 = w1 * s1[None, :]
        b1 = b1 * s1 + t1
        w2 = w2 * s2[None, :]
        b2 = b2 * s2 + t2

    I_pad = _round_up(I, 128)
    O_pad = _round_up(O, 128)
    # Padded w1 columns / w2 rows are zero and padded biases are zero, so the
    # padding never leaks into the real output columns.
    return {
        "w1": _pad_2d(w1.astype(jnp.float32), E, I_pad).astype(jnp.bfloat16),
        "b1": _pad_2d(b1.reshape(1, I).astype(jnp.float32), 1, I_pad),
        "w2": _pad_2d(w2.astype(jnp.float32), I_pad, O_pad).astype(jnp.bfloat16),
        "b2": _pad_2d(b2.reshape(1, O).astype(jnp.float32), 1, O_pad),
        "dims": (E, I, O, I_pad, O_pad),
    }


# ------------------------------- hot-path call -------------------------------

def decoder_forward(x, prepped):
    B, E = x.shape
    E_w, I, O, I_pad, O_pad = prepped["dims"]
    assert E == E_w, "encoding size mismatch between x and prepared params"

    x_itemsize = jnp.dtype(x.dtype).itemsize
    out_itemsize = x_itemsize

    cap = _vmem_capacity_bytes()
    budget = int(0.6 * cap)  # leave headroom for compiler scratch

    # Resident footprint: bf16 weights (single-buffered) + f32 biases.
    resident = 2 * (E * I_pad + I_pad * O_pad) + 4 * (I_pad + O_pad)

    def per_tile_bytes(tb):
        return (2 * tb * E * x_itemsize          # x tiles, double-buffered
                + 2 * tb * O_pad * out_itemsize  # out tiles, double-buffered
                + tb * I_pad * 4                 # h intermediate (f32)
                + tb * O_pad * 4)                # y pre-activation (f32)

    # VMEM-driven batch tile (large tiles amortize the ~0.35 us per-step cost).
    TB = 8
    for tb in (2048, 1024, 512, 256, 128, 64, 32, 16, 8):
        if resident + per_tile_bytes(tb) <= budget:
            TB = tb
            break

    B8 = _round_up(B, 8)
    TB = min(TB, B8)  # never exceed the (sublane-rounded) batch
    if B8 >= 512:
        # Keep >= 2 grid steps so the "parallel" batch axis can shard across
        # both TensorCores on v7x (no-op on single-TC v5e/v6e).
        TB = min(TB, max(256, _round_up(pl.cdiv(B8, 2), 256)))
    TB = max(TB, 8)
    n_tiles = pl.cdiv(B, TB)

    vmem_limit = int(min(int(0.85 * cap),
                         max(2 * (resident + per_tile_bytes(TB)),
                             8 * 1024 * 1024)))

    cost = pl.CostEstimate(
        flops=2 * B * (E * I_pad + I_pad * O_pad),
        transcendentals=B * O_pad,  # sigmoid exp
        bytes_accessed=(x_itemsize * B * E
                        + 2 * (E * I_pad + I_pad * O_pad)
                        + 4 * (I_pad + O_pad)
                        + out_itemsize * B * O_pad),
    )

    out_p = pl.pallas_call(
        _decoder_kernel,
        out_shape=jax.ShapeDtypeStruct((B, O_pad), x.dtype),
        grid_spec=pltpu.PrefetchScalarGridSpec(
            num_scalar_prefetch=0,
            grid=(n_tiles,),
            in_specs=[
                # x: tiled over the batch (E is the full, unpadded dim).
                pl.BlockSpec((TB, E), lambda i: (i, 0)),
                # Weights / biases: VMEM-resident, single-buffered.
                pl.BlockSpec((E, I_pad), lambda i: (0, 0),
                             pipeline_mode=pl.Buffered(1)),
                pl.BlockSpec((1, I_pad), lambda i: (0, 0),
                             pipeline_mode=pl.Buffered(1)),
                pl.BlockSpec((I_pad, O_pad), lambda i: (0, 0),
                             pipeline_mode=pl.Buffered(1)),
                pl.BlockSpec((1, O_pad), lambda i: (0, 0),
                             pipeline_mode=pl.Buffered(1)),
            ],
            out_specs=pl.BlockSpec((TB, O_pad), lambda i: (i, 0)),
        ),
        compiler_params=pltpu.CompilerParams(
            dimension_semantics=("parallel",),
            vmem_limit_bytes=vmem_limit,
        ),
        cost_estimate=cost,
    )(x, prepped["w1"], prepped["b1"], prepped["w2"], prepped["b2"])

    return out_p if O_pad == O else out_p[:, :O]


# ------------------------- deterministic param init -------------------------

def init_params(key, output_size, intermediate_size, encoding_size):
    ks = jax.random.split(key, 8)
    lim1 = 1.0 / jnp.sqrt(encoding_size)
    lim2 = 1.0 / jnp.sqrt(intermediate_size)
    return {
        "w1": jax.random.uniform(ks[0], (encoding_size, intermediate_size),
                                 jnp.float32, -lim1, lim1),
        "b1": jax.random.uniform(ks[1], (intermediate_size,), jnp.float32, -lim1, lim1),
        "w2": jax.random.uniform(ks[2], (intermediate_size, output_size),
                                 jnp.float32, -lim2, lim2),
        "b2": jax.random.uniform(ks[3], (output_size,), jnp.float32, -lim2, lim2),
        # BatchNorm1d parameters / running stats (eval mode)
        "bn1_gamma": 1.0 + 0.1 * jax.random.normal(ks[4], (intermediate_size,), jnp.float32),
        "bn1_beta": 0.1 * jax.random.normal(ks[5], (intermediate_size,), jnp.float32),
        "bn1_mean": jnp.zeros((intermediate_size,), jnp.float32),
        "bn1_var": jnp.ones((intermediate_size,), jnp.float32),
        "bn2_gamma": 1.0 + 0.1 * jax.random.normal(ks[6], (output_size,), jnp.float32),
        "bn2_beta": 0.1 * jax.random.normal(ks[7], (output_size,), jnp.float32),
        "bn2_mean": jnp.zeros((output_size,), jnp.float32),
        "bn2_var": jnp.ones((output_size,), jnp.float32),
    }


# ----------------------------- reference (JAX) ------------------------------

def decoder_reference(x, p, *, is_enable_bath_norm):
    eps = 1e-5
    h = x @ p["w1"] + p["b1"]
    if is_enable_bath_norm:
        h = (h - p["bn1_mean"]) / jnp.sqrt(p["bn1_var"] + eps) * p["bn1_gamma"] + p["bn1_beta"]
    h = jnp.maximum(h, 0.0)
    y = h @ p["w2"] + p["b2"]
    if is_enable_bath_norm:
        y = (y - p["bn2_mean"]) / jnp.sqrt(p["bn2_var"] + eps) * p["bn2_gamma"] + p["bn2_beta"]
    return jax.nn.sigmoid(y)


# --------------------------------- main --------------------------------------

if __name__ == "__main__":
    key = jax.random.PRNGKey(0)
    encoding_size, intermediate_size, output_size = 16, 32, 64

    kx, kx2, kp = jax.random.split(key, 3)
    params = init_params(kp, output_size, intermediate_size, encoding_size)

    # bf16 MXU operands => looser tolerance than the f32 reference (~2e-2 abs).
    TOL = 2e-2
    ok = True
    for B, kkey in ((8, kx), (20, kx2)):  # 20 exercises the partial last block
        x = jax.random.normal(kkey, (B, encoding_size), jnp.float32)
        for use_bn in (True, False):
            prepped = prepare_decoder_params(params, is_enable_bath_norm=use_bn)
            out = decoder_forward(x, prepped)
            out = jax.block_until_ready(out)
            ref = decoder_reference(x, params, is_enable_bath_norm=use_bn)
            if out.shape != ref.shape or not jnp.allclose(out, ref, atol=TOL, rtol=TOL):
                ok = False

    print("KERNEL_OK" if ok else "KERNEL_MISMATCH")
</pallas_src>

<mosaic_0001>
module attributes {stable_mosaic.version = 11 : i64} {
  func.func @_decoder_kernel(%arg0: i32, %arg1: memref<8x16xf32, #tpu.memory_space<vmem>>, %arg2: memref<16x128xbf16, #tpu.memory_space<vmem>>, %arg3: memref<1x128xf32, #tpu.memory_space<vmem>>, %arg4: memref<128x128xbf16, #tpu.memory_space<vmem>>, %arg5: memref<1x128xf32, #tpu.memory_space<vmem>>, %arg6: memref<8x128xf32, #tpu.memory_space<vmem>>) attributes {dimension_semantics = [#tpu.dimension_semantics<parallel>], iteration_bounds = array<i64: 1>, scalar_prefetch = 0 : i64, scratch_operands = 0 : i64, tpu.core_type = #tpu.core_type<tc>, window_params = [{transform_indices = @transform_0, window_bounds = array<i64: 8, 16>}, {pipeline_mode = #tpu.pipeline_mode<synchronous>, transform_indices = @transform_1, window_bounds = array<i64: 16, 128>}, {pipeline_mode = #tpu.pipeline_mode<synchronous>, transform_indices = @transform_2, window_bounds = array<i64: 1, 128>}, {pipeline_mode = #tpu.pipeline_mode<synchronous>, transform_indices = @transform_3, window_bounds = array<i64: 128, 128>}, {pipeline_mode = #tpu.pipeline_mode<synchronous>, transform_indices = @transform_4, window_bounds = array<i64: 1, 128>}, {transform_indices = @transform_5, window_bounds = array<i64: 8, 128>}]} {
    %c0 = arith.constant 0 : index
    %c0_0 = arith.constant 0 : index
    %0 = vector.load %arg1[%c0, %c0_0] : memref<8x16xf32, #tpu.memory_space<vmem>>, vector<8x16xf32>
    %1 = arith.truncf %0 : vector<8x16xf32> to vector<8x16xbf16>
    %c0_1 = arith.constant 0 : index
    %c0_2 = arith.constant 0 : index
    %2 = vector.load %arg2[%c0_1, %c0_2] : memref<16x128xbf16, #tpu.memory_space<vmem>>, vector<16x128xbf16>
    %cst = arith.constant dense<0.000000e+00> : vector<8x128xf32>
    %3 = tpu.matmul %1, %2, %cst {dimension_numbers = #tpu.dot_dimension_numbers<[1], [0], [0], [1], [0, 0, 1, 1], [], []>} : vector<8x16xbf16>, vector<16x128xbf16>, vector<8x128xf32> -> vector<8x128xf32>
    %c0_3 = arith.constant 0 : index
    %c0_4 = arith.constant 0 : index
    %4 = vector.load %arg3[%c0_3, %c0_4] : memref<1x128xf32, #tpu.memory_space<vmem>>, vector<1x128xf32>
    %5 = vector.broadcast %4 : vector<1x128xf32> to vector<8x128xf32>
    %6 = arith.addf %3, %5 : vector<8x128xf32>
    %cst_5 = arith.constant 0.000000e+00 : f32
    %7 = vector.broadcast %cst_5 : f32 to vector<8x128xf32>
    %8 = arith.maximumf %6, %7 : vector<8x128xf32>
    %9 = arith.truncf %8 : vector<8x128xf32> to vector<8x128xbf16>
    %c0_6 = arith.constant 0 : index
    %c0_7 = arith.constant 0 : index
    %10 = vector.load %arg4[%c0_6, %c0_7] : memref<128x128xbf16, #tpu.memory_space<vmem>>, vector<128x128xbf16>
    %cst_8 = arith.constant dense<0.000000e+00> : vector<8x128xf32>
    %11 = tpu.matmul %9, %10, %cst_8 {dimension_numbers = #tpu.dot_dimension_numbers<[1], [0], [0], [1], [0, 0, 1, 1], [], []>} : vector<8x128xbf16>, vector<128x128xbf16>, vector<8x128xf32> -> vector<8x128xf32>
    %c0_9 = arith.constant 0 : index
    %c0_10 = arith.constant 0 : index
    %12 = vector.load %arg5[%c0_9, %c0_10] : memref<1x128xf32, #tpu.memory_space<vmem>>, vector<1x128xf32>
    %13 = vector.broadcast %12 : vector<1x128xf32> to vector<8x128xf32>
    %14 = arith.addf %11, %13 : vector<8x128xf32>
    %cst_11 = arith.constant 0.000000e+00 : f32
    %15 = vector.broadcast %cst_11 : f32 to vector<8x128xf32>
    %16 = arith.subf %15, %14 : vector<8x128xf32>
    %17 = math.exp %16 : vector<8x128xf32>
    %cst_12 = arith.constant 1.000000e+00 : f32
    %18 = vector.broadcast %cst_12 : f32 to vector<8x128xf32>
    %19 = arith.addf %18, %17 : vector<8x128xf32>
    %20 = tpu.reciprocal %19 {approx = true} : vector<8x128xf32> -> vector<8x128xf32>
    %c0_13 = arith.constant 0 : index
    %c0_14 = arith.constant 0 : index
    %21 = vector.load %arg6[%c0_13, %c0_14] : memref<8x128xf32, #tpu.memory_space<vmem>>, vector<8x128xf32>
    tpu.vector_store %arg6[%c0_13, %c0_14], %20 {strides = array<i32>} : memref<8x128xf32, #tpu.memory_space<vmem>>, vector<8x128xf32>,
    return
  }
  func.func @transform_0(%arg0: i32) -> (i32, i32) {
    %c0_i32 = arith.constant 0 : i32
    %c0_i32_0 = arith.constant 0 : i32
    return %arg0, %c0_i32 : i32, i32
  }
  func.func @transform_1(%arg0: i32) -> (i32, i32) {
    %c0_i32 = arith.constant 0 : i32
    %c0_i32_0 = arith.constant 0 : i32
    %c0_i32_1 = arith.constant 0 : i32
    return %c0_i32, %c0_i32_0 : i32, i32
  }
  func.func @transform_2(%arg0: i32) -> (i32, i32) {
    %c0_i32 = arith.constant 0 : i32
    %c0_i32_0 = arith.constant 0 : i32
    %c0_i32_1 = arith.constant 0 : i32
    return %c0_i32, %c0_i32_0 : i32, i32
  }
  func.func @transform_3(%arg0: i32) -> (i32, i32) {
    %c0_i32 = arith.constant 0 : i32
    %c0_i32_0 = arith.constant 0 : i32
    %c0_i32_1 = arith.constant 0 : i32
    return %c0_i32, %c0_i32_0 : i32, i32
  }
  func.func @transform_4(%arg0: i32) -> (i32, i32) {
    %c0_i32 = arith.constant 0 : i32
    %c0_i32_0 = arith.constant 0 : i32
    %c0_i32_1 = arith.constant 0 : i32
    return %c0_i32, %c0_i32_0 : i32, i32
  }
  func.func @transform_5(%arg0: i32) -> (i32, i32) {
    %c0_i32 = arith.constant 0 : i32
    %c0_i32_0 = arith.constant 0 : i32
    return %arg0, %c0_i32 : i32, i32
  }
}

</mosaic_0001>

<llo_original>
// kernel: tpu_custom_call.1
$region0: #{tpu_custom_call.1}
  #allocation0 [shape = 'u32[]', space=smem, size = 0x4, offset = 0x4, fixed_abs, tag = 'smem constant byte address 0x4 - core index']
  #allocation1 [shape = 'u32[144,128]{1,0:T(1,128)}', space=vmem, size = 0x12000, scoped, tag = 'internal scratch']
  %s0 = inlined_call_operand.hbm [shape: f32[8,16], index: 0, kind: input, shape index: {}]
  %s1 = inlined_call_operand.hbm [shape: bf16[16,128], index: 1, kind: input, shape index: {}]
  %s2 = inlined_call_operand.vmem [shape: f32[1,128], index: 2, kind: input, shape index: {}]
  %s3 = inlined_call_operand.hbm [shape: bf16[128,128], index: 3, kind: input, shape index: {}]
  %s4 = inlined_call_operand.vmem [shape: f32[1,128], index: 4, kind: input, shape index: {}]
  %s5 = inlined_call_operand.hbm [shape: f32[8,128], index: 5, kind: output, shape index: {}]
  %s6 = sld [smem:[#allocation0]]
  $region42: #{tpu_custom_call.1} parent=0
    _
  %s8 = ssub.s32 1, %s6
  %s9 = scalar_select 0, %s8, %s6
  $region1: #{tpu_custom_call.1} parent=0
    #allocation2 [shape = 'u8[4096]{0}', space=vmem, size = 0x1000, scoped, tag = 'input window, operand 0, single buffered']
    #allocation3 [shape = 's32[1]{0}', space=sflag, size = 0x4, scoped, tag = 'scoped memory for tpu_custom_call.1']
    #allocation4 [shape = 's32[1]{0}', space=sflag, size = 0x4, scoped, tag = 'scoped memory for tpu_custom_call.1']
    #allocation5 [shape = 'u8[4096]{0}', space=vmem, size = 0x1000, scoped, tag = 'input window, operand 1, single buffered']
    #allocation6 [shape = 's32[1]{0}', space=sflag, size = 0x4, scoped, tag = 'scoped memory for tpu_custom_call.1']
    #allocation7 [shape = 'u8[32768]{0}', space=vmem, size = 0x8000, scoped, tag = 'input window, operand 3, single buffered']
    #allocation8 [shape = 'u8[4096]{0}', space=vmem, size = 0x1000, scoped, tag = 'output window, operand 0, single buffered']
    %10 = vsyncpa [#allocation3], 0
    %11 = vsyncpa [#allocation6], 0
    %12 = vsyncpa [#allocation4], 0
    // Predicated region
    $region2: #{tpu_custom_call.1} parent=1 // pred_check
      _
    $region3: #{tpu_custom_call.1} parent=1 // pred_check_branch
      %14 = sbr.rel (0) target = $region5
    $region4: #{tpu_custom_call.1} parent=1 // pred_region
      %s16 = ssub.s32 128, 128
      %17 = vsyncadd [#allocation3], %s16
      %s19 = sshll.u32 [#allocation2], 4
      %s20 = int_to_ptr.vmem [resolvable:$true] %s19
      %22 = dma.hbm_to_vmem [thread:$0]  %s0, 128, %s20, [#allocation3]
    $region5: #{tpu_custom_call.1} parent=1 // pred_fallthru
      _
    // Predicated region
    $region6: #{tpu_custom_call.1} parent=1 // pred_check
      _
    $region7: #{tpu_custom_call.1} parent=1 // pred_check_branch
      %24 = sbr.rel (0) target = $region9
    $region8: #{tpu_custom_call.1} parent=1 // pred_region
      %s26 = ssub.s32 128, 128
      %27 = vsyncadd [#allocation6], %s26
      %s28 = sshll.u32 [#allocation5], 4
      %s29 = int_to_ptr.vmem [resolvable:$true] %s28
      %34 = dma.hbm_to_vmem [thread:$0]  %s1, 128, %s29, [#allocation6], 64, 64, 4
    $region9: #{tpu_custom_call.1} parent=1 // pred_fallthru
      _
    // Predicated region
    $region10: #{tpu_custom_call.1} parent=1 // pred_check
      _
    $region11: #{tpu_custom_call.1} parent=1 // pred_check_branch
      %36 = sbr.rel (0) target = $region13
    $region12: #{tpu_custom_call.1} parent=1 // pred_region
      _
    $region13: #{tpu_custom_call.1} parent=1 // pred_fallthru
      _
    // Predicated region
    $region14: #{tpu_custom_call.1} parent=1 // pred_check
      _
    $region15: #{tpu_custom_call.1} parent=1 // pred_check_branch
      %38 = sbr.rel (0) target = $region17
    $region16: #{tpu_custom_call.1} parent=1 // pred_region
      %s40 = ssub.s32 1024, 1024
      %41 = vsyncadd [#allocation6], %s40
      %s42 = sshll.u32 [#allocation7], 4
      %s43 = int_to_ptr.vmem [resolvable:$true] %s42
      %48 = dma.hbm_to_vmem [thread:$0]  %s3, 1024, %s43, [#allocation6], 64, 64, 4
    $region17: #{tpu_custom_call.1} parent=1 // pred_fallthru
      _
    // Predicated region
    $region18: #{tpu_custom_call.1} parent=1 // pred_check
      _
    $region19: #{tpu_custom_call.1} parent=1 // pred_check_branch
      %50 = sbr.rel (0) target = $region21
    $region20: #{tpu_custom_call.1} parent=1 // pred_region
      _
    $region21: #{tpu_custom_call.1} parent=1 // pred_fallthru
      _
    // Predicated region
    $region22: #{tpu_custom_call.1} parent=1 // pred_check
      _
    $region23: #{tpu_custom_call.1} parent=1 // pred_check_branch
      %52 = sbr.rel (0) target = $region25
    $region24: #{tpu_custom_call.1} parent=1 // pred_region
      %53 = dma.done [#allocation3], 128
    $region25: #{tpu_custom_call.1} parent=1 // pred_fallthru
      _
    // Predicated region
    $region26: #{tpu_custom_call.1} parent=1 // pred_check
      _
    $region27: #{tpu_custom_call.1} parent=1 // pred_check_branch
      %55 = sbr.rel (0) target = $region29
    $region28: #{tpu_custom_call.1} parent=1 // pred_region
      %56 = dma.done [#allocation6], 128
    $region29: #{tpu_custom_call.1} parent=1 // pred_fallthru
      _
    // Predicated region
    $region30: #{tpu_custom_call.1} parent=1 // pred_check
      _
    $region31: #{tpu_custom_call.1} parent=1 // pred_check_branch
      %58 = sbr.rel (0) target = $region33
    $region32: #{tpu_custom_call.1} parent=1 // pred_region
      %59 = dma.done [#allocation6], 1024
    $region33: #{tpu_custom_call.1} parent=1 // pred_fallthru
      _
    %v61 = vld [vmem:[#allocation2] sm:$0xff]
    %v62 = vpack.c.bf16 %v61, %v61
    %v63 = vld [vmem:[#allocation5] sm:$0xf]
    %v64 = vld [vmem:[#allocation5 + $0x4] sm:$0xf]
    %v65 = vld [vmem:[%s2] sm:$0x1]
    %v67 = vlaneseq
    %v68 = vshrl.u32 %v67, 7
    %v69 = vsub.s32 0, %v68
    %v70 = vrot.slane %v65, %v69
    %v74 = vunpack.c.l.b16 %v63
    %v75 = vunpack.c.l.b16 %v64
    %v76 = vpack.c.b16 %v75, %v74
    %vm78 = vcmask 130048
    %v80 = vsel %vm78, %v62, 0
    %82 = vmatprep.subr.bf16.mxu0 0
    %83 = vmatpush1.bf16.msra.mxu0 0
    %84 = vmatprep.subr.bf16.mxu0 0
    %85 = vmatpush1.bf16.msra.mxu0 0
    %86 = vmatprep.subr.bf16.mxu0 0
    %87 = vmatpush1.bf16.msra.mxu0 0
    %88 = vmatprep.subr.bf16.mxu0 0
    %89 = vmatpush1.bf16.msra.mxu0 0
    %90 = vmatprep.subr.bf16.mxu0 0
    %91 = vmatpush1.bf16.msra.mxu0 0
    %92 = vmatprep.subr.bf16.mxu0 0
    %93 = vmatpush1.bf16.msra.mxu0 0
    %94 = vmatprep.subr.bf16.mxu0 0
    %95 = vmatpush1.bf16.msra.mxu0 0
    %96 = vmatprep.subr.bf16.mxu0 0
    %97 = vmatpush1.bf16.msra.mxu0 %v76
    %98 = vmatprep.subr.bf16.mxu0 0
    %99 = vmatpush2.bf16.msra.mxu0 0
    %100 = vmatprep.subr.bf16.mxu0 0
    %101 = vmatpush2.bf16.msra.mxu0 0
    %102 = vmatprep.subr.bf16.mxu0 0
    %103 = vmatpush2.bf16.msra.mxu0 0
    %104 = vmatprep.subr.bf16.mxu0 0
    %105 = vmatpush2.bf16.msra.mxu0 0
    %106 = vmatprep.subr.bf16.mxu0 0
    %107 = vmatpush2.bf16.msra.mxu0 0
    %108 = vmatprep.subr.bf16.mxu0 0
    %109 = vmatpush2.bf16.msra.mxu0 0
    %110 = vmatprep.subr.bf16.mxu0 0
    %111 = vmatpush2.bf16.msra.mxu0 0
    %112 = vmatprep.subr.bf16.mxu0 0
    %113 = vmatpush2.bf16.msra.mxu0 0
    %114 = vmatprep.mubr.bf16.mxu0 0
    %115 = vmatmul.mubr.bf16.gmra.mxu0 %v80
    %v116 = vpop.f32.mrf.mxu0
    %v117 = vadd.f32 %v70, %v116
    %v118 = vpop.f32.mrf.mxu0
    %v119 = vpop.f32.mrf.mxu0
    %v120 = vpop.f32.mrf.mxu0
    %121 = vdwg.mxu0
    %v122 = vmax.f32 %v117, 0.0
    %v123 = vpack.c.bf16 %v122, %v122
    %v124 = vld [vmem:[#allocation7] sm:$0xf]
    %v125 = vld [vmem:[#allocation7 + $0x4] sm:$0xf]
    %v126 = vld [vmem:[#allocation7 + $0x8] sm:$0xf]
    %v127 = vld [vmem:[#allocation7 + $0xc] sm:$0xf]
    %v128 = vld [vmem:[#allocation7 + $0x10] sm:$0xf]
    %v129 = vld [vmem:[#allocation7 + $0x14] sm:$0xf]
    %v130 = vld [vmem:[#allocation7 + $0x18] sm:$0xf]
    %v131 = vld [vmem:[#allocation7 + $0x1c] sm:$0xf]
    %v132 = vld [vmem:[#allocation7 + $0x20] sm:$0xf]
    %v133 = vld [vmem:[#allocation7 + $0x24] sm:$0xf]
    %v134 = vld [vmem:[#allocation7 + $0x28] sm:$0xf]
    %v135 = vld [vmem:[#allocation7 + $0x2c] sm:$0xf]
    %v136 = vld [vmem:[#allocation7 + $0x30] sm:$0xf]
    %v137 = vld [vmem:[#allocation7 + $0x34] sm:$0xf]
    %v138 = vld [vmem:[#allocation7 + $0x38] sm:$0xf]
    %v139 = vld [vmem:[#allocation7 + $0x3c] sm:$0xf]
    %v140 = vld [vmem:[%s4] sm:$0x1]
    %v142 = vlaneseq
    %v143 = vshrl.u32 %v142, 7
    %v144 = vsub.s32 0, %v143
    %v145 = vrot.slane %v140, %v144
    %v163 = vunpack.c.l.b16 %v124
    %v164 = vunpack.c.l.b16 %v125
    %v165 = vunpack.c.l.b16 %v126
    %v166 = vunpack.c.l.b16 %v127
    %v167 = vunpack.c.l.b16 %v128
    %v168 = vunpack.c.l.b16 %v129
    %v169 = vunpack.c.l.b16 %v130
    %v170 = vunpack.c.l.b16 %v131
    %v171 = vunpack.c.l.b16 %v132
    %v172 = vunpack.c.l.b16 %v133
    %v173 = vunpack.c.l.b16 %v134
    %v174 = vunpack.c.l.b16 %v135
    %v175 = vunpack.c.l.b16 %v136
    %v176 = vunpack.c.l.b16 %v137
    %v177 = vunpack.c.l.b16 %v138
    %v178 = vunpack.c.l.b16 %v139
    %v179 = vpack.c.b16 %v164, %v163
    %v180 = vpack.c.b16 %v166, %v165
    %v181 = vpack.c.b16 %v168, %v167
    %v182 = vpack.c.b16 %v170, %v169
    %v183 = vpack.c.b16 %v172, %v171
    %v184 = vpack.c.b16 %v174, %v173
    %v185 = vpack.c.b16 %v176, %v175
    %v186 = vpack.c.b16 %v178, %v177
    %195 = vmatprep.subr.bf16.mxu0 0
    %196 = vmatpush1.bf16.msra.mxu0 %v186
    %197 = vmatprep.subr.bf16.mxu0 0
    %198 = vmatpush1.bf16.msra.mxu0 %v185
    %199 = vmatprep.subr.bf16.mxu0 0
    %200 = vmatpush1.bf16.msra.mxu0 %v184
    %201 = vmatprep.subr.bf16.mxu0 0
    %202 = vmatpush1.bf16.msra.mxu0 %v183
    %203 = vmatprep.subr.bf16.mxu0 0
    %204 = vmatpush1.bf16.msra.mxu0 %v182
    %205 = vmatprep.subr.bf16.mxu0 0
    %206 = vmatpush1.bf16.msra.mxu0 %v181
    %207 = vmatprep.subr.bf16.mxu0 0
    %208 = vmatpush1.bf16.msra.mxu0 %v180
    %209 = vmatprep.subr.bf16.mxu0 0
    %210 = vmatpush1.bf16.msra.mxu0 %v179
    %211 = vmatprep.subr.bf16.mxu0 0
    %212 = vmatpush2.bf16.msra.mxu0 0
    %213 = vmatprep.subr.bf16.mxu0 0
    %214 = vmatpush2.bf16.msra.mxu0 0
    %215 = vmatprep.subr.bf16.mxu0 0
    %216 = vmatpush2.bf16.msra.mxu0 0
    %217 = vmatprep.subr.bf16.mxu0 0
    %218 = vmatpush2.bf16.msra.mxu0 0
    %219 = vmatprep.subr.bf16.mxu0 0
    %220 = vmatpush2.bf16.msra.mxu0 0
    %221 = vmatprep.subr.bf16.mxu0 0
    %222 = vmatpush2.bf16.msra.mxu0 0
    %223 = vmatprep.subr.bf16.mxu0 0
    %224 = vmatpush2.bf16.msra.mxu0 0
    %225 = vmatprep.subr.bf16.mxu0 0
    %226 = vmatpush2.bf16.msra.mxu0 0
    %227 = vmatprep.mubr.bf16.mxu0 0
    %228 = vmatmul.mubr.bf16.gmra.mxu0 %v123
    %v229 = vpop.f32.mrf.mxu0
    %v230 = vadd.f32 %v145, %v229
    %v231 = vpop.f32.mrf.mxu0
    %v232 = vpop.f32.mrf.mxu0
    %v233 = vpop.f32.mrf.mxu0
    %234 = vdwg.mxu0
    %v235 = vsub.f32 0.0, %v230
    %v236 = vmul.f32 %v235, 1.442695
    %v237 = vpow.pop %v236
    %v238 = vadd.f32 %v237, 1.0
    %v239 = vrcp.pop %v238
    %240 = vst [vmem:[#allocation8] sm:$0xff] %v239
    // Predicated region
    $region34: #{tpu_custom_call.1} parent=1 // pred_check
      _
    $region35: #{tpu_custom_call.1} parent=1 // pred_check_branch
      %242 = sbr.rel (0) target = $region37
    $region36: #{tpu_custom_call.1} parent=1 // pred_region
      %s244 = ssub.s32 128, 128
      %245 = vsyncadd [#allocation4], %s244
      %s247 = sshll.u32 [#allocation8], 4
      %s248 = int_to_ptr.vmem [resolvable:$true] %s247
      %250 = dma.vmem_to_hbm [thread:$0]  %s248, 128, %s5, [#allocation4]
    $region37: #{tpu_custom_call.1} parent=1 // pred_fallthru
      _
    // Predicated region
    $region38: #{tpu_custom_call.1} parent=1 // pred_check
      _
    $region39: #{tpu_custom_call.1} parent=1 // pred_check_branch
      %252 = sbr.rel (0) target = $region41
    $region40: #{tpu_custom_call.1} parent=1 // pred_region
      %253 = dma.done [#allocation4], 128
    $region41: #{tpu_custom_call.1} parent=1 // pred_fallthru
      _
    %254 = vsyncpa [#allocation3], 1
    %255 = vsyncpa [#allocation6], 1
    %256 = vsyncpa [#allocation4], 1

</llo_original>
